<compile_context>
chip_gen: v7x
topology: tpu7x:2x2x1
jax: 0.10.0
libtpu: 0.0.40
codegen_flags: <defaults>
</compile_context>

<pallas_src>
import math

import jax
import jax.numpy as jnp
from jax.experimental import pallas as pl
from jax.experimental.pallas import tpu as pltpu

LOOK_BACK = 20
MONTH_DIM = 4
INPUT_DIM = LOOK_BACK + MONTH_DIM   # 24
HIDDEN_DIM = 128
FC_DIM = 32
BN_EPS = 1e-5

# Batch rows per grid step (sweep-friendly).  At 2048: gates (2048, 384) f32 = 3 MiB,
# a handful of (2048, 128) f32 temps, tiny resident weights and a double-buffered
# bf16 (2048, 24) input -> ~10 MiB peak, well under the default scoped VMEM.
TILE_B = 2048


def _round_up(x, m):
    return (x + m - 1) // m * m


def lstm_model_kernel(x_ref, w_gates_ref, b_gates_ref, w1_ref, b1_ref,
                      w2_ref, b2_ref, out_ref):
    """Fused (BN-folded) single-step LSTM (i,g,o gates only) -> Linear/ReLU/Linear."""
    H = HIDDEN_DIM

    x = x_ref[...]                                # (T, 24) bf16 (cast in wrapper)

    # Single merged gate GEMM.  BatchNorm is folded into the weights/bias in the
    # wrapper; the f gate is omitted because f * c0 == 0 for a length-1 sequence
    # with zero initial state.  Accumulation is f32.
    gates = (jnp.dot(x, w_gates_ref[...], preferred_element_type=jnp.float32)
             + b_gates_ref[...])                  # (T, 3H) f32

    # sigmoid(x) == 0.5 * tanh(0.5 * x) + 0.5  -> one EUP op instead of exp+recip.
    i_g = 0.5 * jnp.tanh(0.5 * gates[:, 0 * H:1 * H]) + 0.5
    g_g = jnp.tanh(gates[:, 1 * H:2 * H])
    o_g = 0.5 * jnp.tanh(0.5 * gates[:, 2 * H:3 * H]) + 0.5

    c = i_g * g_g                                 # f*c0 + i*g with c0 == 0
    h = o_g * jnp.tanh(c)                         # (T, H) == lstm_out[:, -1, :]

    # fc: Linear(H, 32) -> ReLU -> Dropout(eval: identity)
    z = jnp.dot(h.astype(jnp.bfloat16), w1_ref[...],
                preferred_element_type=jnp.float32) + b1_ref[...]
    z = jnp.maximum(z, 0.0)                       # (T, 32) f32

    # Final Linear(32, 1), computed as (1, 32) @ z^T (bf16 operands, f32 accum) so
    # per-row scalars land lane-major: the output block is a lane-dense (1, T) slab.
    out_row = jax.lax.dot_general(
        w2_ref[...], z.astype(jnp.bfloat16),
        dimension_numbers=(((1,), (1,)), ((), ())),
        preferred_element_type=jnp.float32)       # (1, T)
    out_ref[...] = (out_row + b2_ref[...]).astype(out_ref.dtype)


def init_params(key):
    """Deterministic parameter init mirroring the PyTorch module's __init__."""
    ks = jax.random.split(key, 6)
    H, D = HIDDEN_DIM, INPUT_DIM
    k = 1.0 / math.sqrt(H)  # PyTorch LSTM default: U(-1/sqrt(H), 1/sqrt(H))

    w_ih = jax.random.uniform(ks[0], (4 * H, D), minval=-k, maxval=k, dtype=jnp.float32)
    # W_hh is part of the module but unused for a length-1 sequence with h0 = 0.
    w_hh = jax.random.uniform(ks[1], (4 * H, H), minval=-k, maxval=k, dtype=jnp.float32)
    b_ih = jax.random.uniform(ks[2], (4 * H,), minval=-k, maxval=k, dtype=jnp.float32)
    b_hh = jax.random.uniform(ks[3], (4 * H,), minval=-k, maxval=k, dtype=jnp.float32)

    # fc Linears: xavier_normal_ weights, zero biases (per _init_weights).
    w1 = jax.random.normal(ks[4], (FC_DIM, H), dtype=jnp.float32) * math.sqrt(2.0 / (H + FC_DIM))
    b1 = jnp.zeros((FC_DIM,), jnp.float32)
    w2 = jax.random.normal(ks[5], (1, FC_DIM), dtype=jnp.float32) * math.sqrt(2.0 / (FC_DIM + 1))
    b2 = jnp.zeros((1,), jnp.float32)

    # BatchNorm1d defaults: gamma=1, beta=0, running_mean=0, running_var=1.
    return dict(
        w_ih=w_ih, w_hh=w_hh, b_ih=b_ih, b_hh=b_hh,
        w1=w1, b1=b1, w2=w2, b2=b2,
        bn_gamma=jnp.ones((D,), jnp.float32),
        bn_beta=jnp.zeros((D,), jnp.float32),
        bn_running_mean=jnp.zeros((D,), jnp.float32),
        bn_running_var=jnp.ones((D,), jnp.float32),
    )


def lstm_model_forward(day_input, month_input, params):
    B = day_input.shape[0]
    H = HIDDEN_DIM

    # ---- wrapper-side (one-time) parameter preparation ----------------------
    # Drop the dead f-gate rows (PyTorch gate order is i, f, g, o).
    w_ih = params["w_ih"]                           # (4H, 24)
    b_all = params["b_ih"] + params["b_hh"]         # (4H,)
    w_igo = jnp.concatenate([w_ih[:H], w_ih[2 * H:]], axis=0)     # (3H, 24)
    b_igo = jnp.concatenate([b_all[:H], b_all[2 * H:]], axis=0)   # (3H,)

    # Fold eval-mode BatchNorm1d into the input weights / bias.
    inv_std = params["bn_gamma"] / jnp.sqrt(params["bn_running_var"] + BN_EPS)   # (24,)
    bn_shift = params["bn_beta"] - params["bn_running_mean"] * inv_std           # (24,)
    w_eff_t = (w_igo.T * inv_std[:, None]).astype(jnp.bfloat16)   # (24, 3H) bf16
    b_eff = (b_igo + bn_shift @ w_igo.T)[None, :].astype(jnp.float32)  # (1, 3H)

    w1_t = params["w1"].T.astype(jnp.bfloat16)            # (H, 32)
    b1 = params["b1"][None, :].astype(jnp.float32)         # (1, 32)
    w2 = params["w2"].astype(jnp.bfloat16)                 # (1, 32) row
    b2 = params["b2"].reshape(1, 1).astype(jnp.float32)    # (1, 1)

    # ---- input prep: single concatenated bf16 activation --------------------
    x = jnp.concatenate([day_input, month_input], axis=-1).astype(jnp.bfloat16)  # (B, 24)

    # ---- batch tiling / padding ----------------------------------------------
    if B > 2 * TILE_B:
        tile_b = TILE_B
    elif B > 256:
        # >=2 grid steps so ("parallel",) shards the batch across v7x's two TCs;
        # 128-aligned tiles keep the (1, tile_b) output blocks lane-dense.
        tile_b = _round_up(pl.cdiv(B, 2), 128)
    else:
        tile_b = _round_up(max(B, 1), 16)          # single full-extent block
    b_pad = _round_up(B, tile_b)
    if b_pad != B:
        x = jnp.pad(x, ((0, b_pad - B), (0, 0)))
    grid = (b_pad // tile_b,)

    const_spec = lambda rows, cols: pl.BlockSpec((rows, cols), lambda i: (0, 0))

    out = pl.pallas_call(
        lstm_model_kernel,
        out_shape=jax.ShapeDtypeStruct((1, b_pad), jnp.float32),
        grid=grid,
        in_specs=[
            pl.BlockSpec((tile_b, INPUT_DIM), lambda i: (i, 0)),  # x tile (pipelined, bf16)
            const_spec(INPUT_DIM, 3 * H),        # BN-folded gate weight (bf16, resident)
            const_spec(1, 3 * H),                # fused gate bias (f32)
            const_spec(H, FC_DIM),               # w1^T   (bf16, resident)
            const_spec(1, FC_DIM),               # b1
            const_spec(1, FC_DIM),               # w2 row (bf16)
            const_spec(1, 1),                    # b2
        ],
        out_specs=pl.BlockSpec((1, tile_b), lambda i: (0, i)),
        compiler_params=pltpu.CompilerParams(
            dimension_semantics=("parallel",)),
    )(x, w_eff_t, b_eff, w1_t, b1, w2, b2)

    return out[0, :B].reshape(B, 1)


def _reference_forward(day_input, month_input, params):
    """Pure-f32 JAX reference mirroring the PyTorch module in eval mode."""
    H = HIDDEN_DIM
    x = jnp.concatenate([day_input, month_input], axis=-1)
    x = (x - params["bn_running_mean"]) / jnp.sqrt(params["bn_running_var"] + BN_EPS)
    x = x * params["bn_gamma"] + params["bn_beta"]
    gates = x @ params["w_ih"].T + params["b_ih"] + params["b_hh"]
    i = jax.nn.sigmoid(gates[:, 0 * H:1 * H])
    g = jnp.tanh(gates[:, 2 * H:3 * H])
    o = jax.nn.sigmoid(gates[:, 3 * H:4 * H])
    c = i * g                                     # f * c0 == 0
    h = o * jnp.tanh(c)
    z = jnp.maximum(h @ params["w1"].T + params["b1"], 0.0)
    return z @ params["w2"].T + params["b2"]


if __name__ == "__main__":
    key = jax.random.PRNGKey(0)
    k_params, k_day, k_month = jax.random.split(key, 3)

    B = 8
    day_input = jax.random.normal(k_day, (B, LOOK_BACK), dtype=jnp.float32)      # (8, 20)
    month_input = jax.random.normal(k_month, (B, MONTH_DIM), dtype=jnp.float32)  # (8, 4)

    params = init_params(k_params)
    out = lstm_model_forward(day_input, month_input, params)
    out = jax.block_until_ready(out)

    assert out.shape == (B, 1) and out.dtype == jnp.float32

    ref = _reference_forward(day_input, month_input, params)
    assert jnp.allclose(out, ref, rtol=2e-2, atol=2e-2), (out, ref)

    print("KERNEL_OK")
</pallas_src>

<mosaic_0001>
module attributes {stable_mosaic.version = 11 : i64} {
  func.func @lstm_model_kernel(%arg0: i32, %arg1: memref<16x24xbf16, #tpu.memory_space<vmem>>, %arg2: memref<24x384xbf16, #tpu.memory_space<vmem>>, %arg3: memref<1x384xf32, #tpu.memory_space<vmem>>, %arg4: memref<128x32xbf16, #tpu.memory_space<vmem>>, %arg5: memref<1x32xf32, #tpu.memory_space<vmem>>, %arg6: memref<1x32xbf16, #tpu.memory_space<vmem>>, %arg7: memref<1x1xf32, #tpu.memory_space<vmem>>, %arg8: memref<1x16xf32, #tpu.memory_space<vmem>>) attributes {dimension_semantics = [#tpu.dimension_semantics<parallel>], iteration_bounds = array<i64: 1>, scalar_prefetch = 0 : i64, scratch_operands = 0 : i64, tpu.core_type = #tpu.core_type<tc>, window_params = [{transform_indices = @transform_0, window_bounds = array<i64: 16, 24>}, {pipeline_mode = #tpu.pipeline_mode<synchronous>, transform_indices = @transform_1, window_bounds = array<i64: 24, 384>}, {pipeline_mode = #tpu.pipeline_mode<synchronous>, transform_indices = @transform_2, window_bounds = array<i64: 1, 384>}, {pipeline_mode = #tpu.pipeline_mode<synchronous>, transform_indices = @transform_3, window_bounds = array<i64: 128, 32>}, {pipeline_mode = #tpu.pipeline_mode<synchronous>, transform_indices = @transform_4, window_bounds = array<i64: 1, 32>}, {pipeline_mode = #tpu.pipeline_mode<synchronous>, transform_indices = @transform_5, window_bounds = array<i64: 1, 32>}, {pipeline_mode = #tpu.pipeline_mode<synchronous>, transform_indices = @transform_6, window_bounds = array<i64: 1, 1>}, {transform_indices = @transform_7, window_bounds = array<i64: 1, 16>}]} {
    %c0 = arith.constant 0 : index
    %c0_0 = arith.constant 0 : index
    %0 = vector.load %arg1[%c0, %c0_0] : memref<16x24xbf16, #tpu.memory_space<vmem>>, vector<16x24xbf16>
    %c0_1 = arith.constant 0 : index
    %c0_2 = arith.constant 0 : index
    %1 = vector.load %arg2[%c0_1, %c0_2] : memref<24x384xbf16, #tpu.memory_space<vmem>>, vector<24x384xbf16>
    %cst = arith.constant dense<0.000000e+00> : vector<16x384xf32>
    %2 = tpu.matmul %0, %1, %cst {dimension_numbers = #tpu.dot_dimension_numbers<[1], [0], [0], [1], [0, 0, 1, 1], [], []>} : vector<16x24xbf16>, vector<24x384xbf16>, vector<16x384xf32> -> vector<16x384xf32>
    %c0_3 = arith.constant 0 : index
    %c0_4 = arith.constant 0 : index
    %3 = vector.load %arg3[%c0_3, %c0_4] : memref<1x384xf32, #tpu.memory_space<vmem>>, vector<1x384xf32>
    %4 = vector.broadcast %3 : vector<1x384xf32> to vector<16x384xf32>
    %5 = arith.addf %2, %4 : vector<16x384xf32>
    %6 = vector.extract_strided_slice %5 {offsets = [0, 0], sizes = [16, 128], strides = [1, 1]} : vector<16x384xf32> to vector<16x128xf32>
    %cst_5 = arith.constant 5.000000e-01 : f32
    %7 = vector.broadcast %cst_5 : f32 to vector<16x128xf32>
    %8 = arith.mulf %7, %6 : vector<16x128xf32>
    %9 = math.tanh %8 : vector<16x128xf32>
    %cst_6 = arith.constant 5.000000e-01 : f32
    %10 = vector.broadcast %cst_6 : f32 to vector<16x128xf32>
    %11 = arith.mulf %10, %9 : vector<16x128xf32>
    %cst_7 = arith.constant 5.000000e-01 : f32
    %12 = vector.broadcast %cst_7 : f32 to vector<16x128xf32>
    %13 = arith.addf %11, %12 : vector<16x128xf32>
    %14 = vector.extract_strided_slice %5 {offsets = [0, 128], sizes = [16, 128], strides = [1, 1]} : vector<16x384xf32> to vector<16x128xf32>
    %15 = math.tanh %14 : vector<16x128xf32>
    %16 = vector.extract_strided_slice %5 {offsets = [0, 256], sizes = [16, 128], strides = [1, 1]} : vector<16x384xf32> to vector<16x128xf32>
    %cst_8 = arith.constant 5.000000e-01 : f32
    %17 = vector.broadcast %cst_8 : f32 to vector<16x128xf32>
    %18 = arith.mulf %17, %16 : vector<16x128xf32>
    %19 = math.tanh %18 : vector<16x128xf32>
    %cst_9 = arith.constant 5.000000e-01 : f32
    %20 = vector.broadcast %cst_9 : f32 to vector<16x128xf32>
    %21 = arith.mulf %20, %19 : vector<16x128xf32>
    %cst_10 = arith.constant 5.000000e-01 : f32
    %22 = vector.broadcast %cst_10 : f32 to vector<16x128xf32>
    %23 = arith.addf %21, %22 : vector<16x128xf32>
    %24 = arith.mulf %13, %15 : vector<16x128xf32>
    %25 = math.tanh %24 : vector<16x128xf32>
    %26 = arith.mulf %23, %25 : vector<16x128xf32>
    %27 = arith.truncf %26 : vector<16x128xf32> to vector<16x128xbf16>
    %c0_11 = arith.constant 0 : index
    %c0_12 = arith.constant 0 : index
    %28 = vector.load %arg4[%c0_11, %c0_12] : memref<128x32xbf16, #tpu.memory_space<vmem>>, vector<128x32xbf16>
    %cst_13 = arith.constant dense<0.000000e+00> : vector<16x32xf32>
    %29 = tpu.matmul %27, %28, %cst_13 {dimension_numbers = #tpu.dot_dimension_numbers<[1], [0], [0], [1], [0, 0, 1, 1], [], []>} : vector<16x128xbf16>, vector<128x32xbf16>, vector<16x32xf32> -> vector<16x32xf32>
    %c0_14 = arith.constant 0 : index
    %c0_15 = arith.constant 0 : index
    %30 = vector.load %arg5[%c0_14, %c0_15] : memref<1x32xf32, #tpu.memory_space<vmem>>, vector<1x32xf32>
    %31 = vector.broadcast %30 : vector<1x32xf32> to vector<16x32xf32>
    %32 = arith.addf %29, %31 : vector<16x32xf32>
    %cst_16 = arith.constant 0.000000e+00 : f32
    %33 = vector.broadcast %cst_16 : f32 to vector<16x32xf32>
    %34 = arith.maximumf %32, %33 : vector<16x32xf32>
    %c0_17 = arith.constant 0 : index
    %c0_18 = arith.constant 0 : index
    %35 = vector.load %arg6[%c0_17, %c0_18] : memref<1x32xbf16, #tpu.memory_space<vmem>>, vector<1x32xbf16>
    %36 = arith.truncf %34 : vector<16x32xf32> to vector<16x32xbf16>
    %cst_19 = arith.constant dense<0.000000e+00> : vector<1x16xf32>
    %37 = tpu.matmul %35, %36, %cst_19 {dimension_numbers = #tpu.dot_dimension_numbers<[1], [1], [0], [0], [0, 0, 1, 0], [], []>} : vector<1x32xbf16>, vector<16x32xbf16>, vector<1x16xf32> -> vector<1x16xf32>
    %c0_20 = arith.constant 0 : index
    %c0_21 = arith.constant 0 : index
    %38 = vector.load %arg7[%c0_20, %c0_21] : memref<1x1xf32, #tpu.memory_space<vmem>>, vector<1x1xf32>
    %39 = vector.broadcast %38 : vector<1x1xf32> to vector<1x16xf32>
    %40 = arith.addf %37, %39 : vector<1x16xf32>
    %c0_22 = arith.constant 0 : index
    %c0_23 = arith.constant 0 : index
    %41 = vector.load %arg8[%c0_22, %c0_23] : memref<1x16xf32, #tpu.memory_space<vmem>>, vector<1x16xf32>
    tpu.vector_store %arg8[%c0_22, %c0_23], %40 {strides = array<i32>} : memref<1x16xf32, #tpu.memory_space<vmem>>, vector<1x16xf32>,
    return
  }
  func.func @transform_0(%arg0: i32) -> (i32, i32) {
    %c0_i32 = arith.constant 0 : i32
    %c0_i32_0 = arith.constant 0 : i32
    return %arg0, %c0_i32 : i32, i32
  }
  func.func @transform_1(%arg0: i32) -> (i32, i32) {
    %c0_i32 = arith.constant 0 : i32
    %c0_i32_0 = arith.constant 0 : i32
    %c0_i32_1 = arith.constant 0 : i32
    return %c0_i32, %c0_i32_0 : i32, i32
  }
  func.func @transform_2(%arg0: i32) -> (i32, i32) {
    %c0_i32 = arith.constant 0 : i32
    %c0_i32_0 = arith.constant 0 : i32
    %c0_i32_1 = arith.constant 0 : i32
    return %c0_i32, %c0_i32_0 : i32, i32
  }
  func.func @transform_3(%arg0: i32) -> (i32, i32) {
    %c0_i32 = arith.constant 0 : i32
    %c0_i32_0 = arith.constant 0 : i32
    %c0_i32_1 = arith.constant 0 : i32
    return %c0_i32, %c0_i32_0 : i32, i32
  }
  func.func @transform_4(%arg0: i32) -> (i32, i32) {
    %c0_i32 = arith.constant 0 : i32
    %c0_i32_0 = arith.constant 0 : i32
    %c0_i32_1 = arith.constant 0 : i32
    return %c0_i32, %c0_i32_0 : i32, i32
  }
  func.func @transform_5(%arg0: i32) -> (i32, i32) {
    %c0_i32 = arith.constant 0 : i32
    %c0_i32_0 = arith.constant 0 : i32
    %c0_i32_1 = arith.constant 0 : i32
    return %c0_i32, %c0_i32_0 : i32, i32
  }
  func.func @transform_6(%arg0: i32) -> (i32, i32) {
    %c0_i32 = arith.constant 0 : i32
    %c0_i32_0 = arith.constant 0 : i32
    %c0_i32_1 = arith.constant 0 : i32
    return %c0_i32, %c0_i32_0 : i32, i32
  }
  func.func @transform_7(%arg0: i32) -> (i32, i32) {
    %c0_i32 = arith.constant 0 : i32
    %c0_i32_0 = arith.constant 0 : i32
    return %c0_i32, %arg0 : i32, i32
  }
}

</mosaic_0001>

<llo_original>
// kernel: tpu_custom_call.1
$region0: #{tpu_custom_call.1}
  #allocation0 [shape = 'u32[]', space=smem, size = 0x4, offset = 0x4, fixed_abs, tag = 'smem constant byte address 0x4 - core index']
  #allocation1 [shape = 'u32[144,128]{1,0:T(1,128)}', space=vmem, size = 0x12000, scoped, tag = 'internal scratch']
  #allocation2 [shape = 'f32[1,1]{1,0:T(1,128)S(1)}', space=vmem, size = 0x200, scoped, tag = 'scoped memory for tpu_custom_call.1']
  %s0 = inlined_call_operand.vmem [shape: bf16[16,24], index: 0, kind: input, shape index: {}]
  %s1 = inlined_call_operand.vmem [shape: bf16[24,384], index: 1, kind: input, shape index: {}]
  %s2 = inlined_call_operand.vmem [shape: f32[1,384], index: 2, kind: input, shape index: {}]
  %s3 = inlined_call_operand.vmem [shape: bf16[128,32], index: 3, kind: input, shape index: {}]
  %s4 = inlined_call_operand.vmem [shape: f32[1,32], index: 4, kind: input, shape index: {}]
  %s5 = inlined_call_operand.vmem [shape: bf16[1,32], index: 5, kind: input, shape index: {}]
  %s6 = inlined_call_operand.<no memory space> [shape: f32[1,1], index: 6, kind: input, shape index: {}]
  %s7 = inlined_call_operand.hbm [shape: f32[1,16], index: 7, kind: output, shape index: {}]
  %s8 = sld [smem:[#allocation0]]
  $region38: #{tpu_custom_call.1} parent=0
    _
  %s10 = ssub.s32 1, %s8
  %s11 = scalar_select 0, %s10, %s8
  %v12 = vstv %s6
  %13 = vst [vmem:[#allocation2] sm:$0x1] %v12
  $region1: #{tpu_custom_call.1} parent=0
    #allocation3 [shape = 'u8[512]{0}', space=vmem, size = 0x400, scoped, tag = 'output window, operand 0, single buffered']
    #allocation4 [shape = 's32[1]{0}', space=sflag, size = 0x4, scoped, tag = 'scoped memory for tpu_custom_call.1']
    %14 = vsyncpa [#allocation4], 0
    // Predicated region
    $region2: #{tpu_custom_call.1} parent=1 // pred_check
      _
    $region3: #{tpu_custom_call.1} parent=1 // pred_check_branch
      %16 = sbr.rel (0) target = $region5
    $region4: #{tpu_custom_call.1} parent=1 // pred_region
      _
    $region5: #{tpu_custom_call.1} parent=1 // pred_fallthru
      _
    // Predicated region
    $region6: #{tpu_custom_call.1} parent=1 // pred_check
      _
    $region7: #{tpu_custom_call.1} parent=1 // pred_check_branch
      %18 = sbr.rel (0) target = $region9
    $region8: #{tpu_custom_call.1} parent=1 // pred_region
      _
    $region9: #{tpu_custom_call.1} parent=1 // pred_fallthru
      _
    // Predicated region
    $region10: #{tpu_custom_call.1} parent=1 // pred_check
      _
    $region11: #{tpu_custom_call.1} parent=1 // pred_check_branch
      %20 = sbr.rel (0) target = $region13
    $region12: #{tpu_custom_call.1} parent=1 // pred_region
      _
    $region13: #{tpu_custom_call.1} parent=1 // pred_fallthru
      _
    // Predicated region
    $region14: #{tpu_custom_call.1} parent=1 // pred_check
      _
    $region15: #{tpu_custom_call.1} parent=1 // pred_check_branch
      %22 = sbr.rel (0) target = $region17
    $region16: #{tpu_custom_call.1} parent=1 // pred_region
      _
    $region17: #{tpu_custom_call.1} parent=1 // pred_fallthru
      _
    // Predicated region
    $region18: #{tpu_custom_call.1} parent=1 // pred_check
      _
    $region19: #{tpu_custom_call.1} parent=1 // pred_check_branch
      %24 = sbr.rel (0) target = $region21
    $region20: #{tpu_custom_call.1} parent=1 // pred_region
      _
    $region21: #{tpu_custom_call.1} parent=1 // pred_fallthru
      _
    // Predicated region
    $region22: #{tpu_custom_call.1} parent=1 // pred_check
      _
    $region23: #{tpu_custom_call.1} parent=1 // pred_check_branch
      %26 = sbr.rel (0) target = $region25
    $region24: #{tpu_custom_call.1} parent=1 // pred_region
      _
    $region25: #{tpu_custom_call.1} parent=1 // pred_fallthru
      _
    // Predicated region
    $region26: #{tpu_custom_call.1} parent=1 // pred_check
      _
    $region27: #{tpu_custom_call.1} parent=1 // pred_check_branch
      %28 = sbr.rel (0) target = $region29
    $region28: #{tpu_custom_call.1} parent=1 // pred_region
      _
    $region29: #{tpu_custom_call.1} parent=1 // pred_fallthru
      _
    %v30 = vld [vmem:[%s0] sm:$0xf]
    %v31 = vld [vmem:[%s0 + $0x4] sm:$0xf]
    %v32 = vld [vmem:[%s1] sm:$0xff]
    %v33 = vld [vmem:[%s1 + $0x8] sm:$0xf]
    %v34 = vld [vmem:[%s1 + $0xc] sm:$0xff]
    %v35 = vld [vmem:[%s1 + $0x14] sm:$0xf]
    %v36 = vld [vmem:[%s1 + $0x18] sm:$0xff]
    %v37 = vld [vmem:[%s1 + $0x20] sm:$0xf]
    %v38 = vld [vmem:[%s2] sm:$0x7]
    %v40 = vlaneseq
    %v41 = vshrl.u32 %v40, 7
    %v42 = vsub.s32 0, %v41
    %v43 = vrot.slane %v38, %v42
    %v44 = vlaneseq
    %v45 = vshrl.u32 %v44, 7
    %v46 = vsub.s32 1, %v45
    %v47 = vrot.slane %v38, %v46
    %v48 = vlaneseq
    %v49 = vshrl.u32 %v48, 7
    %v50 = vsub.s32 2, %v49
    %v51 = vrot.slane %v38, %v50
    %v57 = vunpack.c.l.b16 %v30
    %v58 = vunpack.c.l.b16 %v31
    %v59 = vpack.c.b16 %v58, %v57
    %v66 = vunpack.c.l.b16 %v32
    %v67 = vunpack.c.h.b16 %v32
    %v68 = vunpack.c.l.b16 %v33
    %v69 = vunpack.c.l.b16 %v34
    %v70 = vunpack.c.h.b16 %v34
    %v71 = vunpack.c.l.b16 %v35
    %v72 = vunpack.c.l.b16 %v36
    %v73 = vunpack.c.h.b16 %v36
    %v74 = vunpack.c.l.b16 %v37
    %v75 = vpack.c.b16 %v69, %v66
    %v76 = vpack.c.b16 %v70, %v67
    %v77 = vpack.c.b16 %v71, %v68
    %v78 = vpack.c.b16 %v72, %v72
    %v79 = vpack.c.b16 %v73, %v73
    %v80 = vpack.c.b16 %v74, %v74
    %vm84 = vcmask 195584
    %v86 = vsel %vm84, %v59, 0
    %vm88 = vcmask 1043456
    %v90 = vsel %vm88, %v78, 0
    %v93 = vsel %vm88, %v79, 0
    %v96 = vsel %vm88, %v80, 0
    %98 = vmatprep.subr.bf16.mxu0 %v76
    %99 = vmatpush1.bf16.msra.mxu0 %v75
    %100 = vmatprep.subr.bf16.mxu0 %v93
    %101 = vmatpush1.bf16.msra.mxu0 %v90
    %102 = vmatprep.subr.bf16.mxu0 0
    %103 = vmatpush1.bf16.msra.mxu0 0
    %104 = vmatprep.subr.bf16.mxu0 0
    %105 = vmatpush1.bf16.msra.mxu0 0
    %106 = vmatprep.subr.bf16.mxu0 0
    %107 = vmatpush1.bf16.msra.mxu0 0
    %108 = vmatprep.subr.bf16.mxu0 0
    %109 = vmatpush1.bf16.msra.mxu0 0
    %110 = vmatprep.subr.bf16.mxu0 0
    %111 = vmatpush1.bf16.msra.mxu0 0
    %112 = vmatprep.subr.bf16.mxu0 0
    %113 = vmatpush1.bf16.msra.mxu0 0
    %114 = vmatprep.subr.bf16.mxu0 0
    %115 = vmatpush1.bf16.msra.mxu0 0
    %116 = vmatprep.subr.bf16.mxu0 0
    %117 = vmatpush1.bf16.msra.mxu0 0
    %118 = vmatprep.subr.bf16.mxu0 0
    %119 = vmatpush1.bf16.msra.mxu0 0
    %120 = vmatprep.subr.bf16.mxu0 0
    %121 = vmatpush1.bf16.msra.mxu0 0
    %122 = vmatprep.subr.bf16.mxu0 0
    %123 = vmatpush1.bf16.msra.mxu0 0
    %124 = vmatprep.subr.bf16.mxu0 0
    %125 = vmatpush1.bf16.msra.mxu0 0
    %126 = vmatprep.subr.bf16.mxu0 0
    %127 = vmatpush1.bf16.msra.mxu0 0
    %128 = vmatprep.subr.bf16.mxu0 0
    %129 = vmatpush1.bf16.msra.mxu0 0
    %130 = vmatprep.mubr.bf16.mxu0 0
    %131 = vmatmul.mubr.bf16.gmra.mrb[0].mxu0 %v86
    %v132 = vpop.f32.mrb[0].mxu0
    %v133 = vadd.f32 %v43, %v132
    %v134 = vpop.f32.mrb[0].mxu0
    %v135 = vadd.f32 %v47, %v134
    %v136 = vpop.f32.mrb[0].mxu0
    %v137 = vadd.f32 %v43, %v136
    %v138 = vpop.f32.mrb[0].mxu0
    %v139 = vadd.f32 %v47, %v138
    %140 = vdwg.mxu0
    %141 = vmatprep.subr.bf16.mxu0 0
    %142 = vmatpush1.bf16.msra.mxu0 %v77
    %143 = vmatprep.subr.bf16.mxu0 0
    %144 = vmatpush1.bf16.msra.mxu0 %v96
    %145 = vmatprep.subr.bf16.mxu0 0
    %146 = vmatpush1.bf16.msra.mxu0 0
    %147 = vmatprep.subr.bf16.mxu0 0
    %148 = vmatpush1.bf16.msra.mxu0 0
    %149 = vmatprep.subr.bf16.mxu0 0
    %150 = vmatpush1.bf16.msra.mxu0 0
    %151 = vmatprep.subr.bf16.mxu0 0
    %152 = vmatpush1.bf16.msra.mxu0 0
    %153 = vmatprep.subr.bf16.mxu0 0
    %154 = vmatpush1.bf16.msra.mxu0 0
    %155 = vmatprep.subr.bf16.mxu0 0
    %156 = vmatpush1.bf16.msra.mxu0 0
    %157 = vmatprep.subr.bf16.mxu0 0
    %158 = vmatpush1.bf16.msra.mxu0 0
    %159 = vmatprep.subr.bf16.mxu0 0
    %160 = vmatpush1.bf16.msra.mxu0 0
    %161 = vmatprep.subr.bf16.mxu0 0
    %162 = vmatpush1.bf16.msra.mxu0 0
    %163 = vmatprep.subr.bf16.mxu0 0
    %164 = vmatpush1.bf16.msra.mxu0 0
    %165 = vmatprep.subr.bf16.mxu0 0
    %166 = vmatpush1.bf16.msra.mxu0 0
    %167 = vmatprep.subr.bf16.mxu0 0
    %168 = vmatpush1.bf16.msra.mxu0 0
    %169 = vmatprep.subr.bf16.mxu0 0
    %170 = vmatpush1.bf16.msra.mxu0 0
    %171 = vmatprep.subr.bf16.mxu0 0
    %172 = vmatpush1.bf16.msra.mxu0 0
    %173 = vmatprep.mubr.bf16.mxu0 0
    %174 = vmatmul.mubr.bf16.gmra.mrb[0].mxu0 %v86
    %v175 = vpop.f32.mrb[0].mxu0
    %v176 = vadd.f32 %v51, %v175
    %v177 = vpop.f32.mrb[0].mxu0
    %v178 = vpop.f32.mrb[0].mxu0
    %v179 = vadd.f32 %v51, %v178
    %v180 = vpop.f32.mrb[0].mxu0
    %181 = vdwg.mxu0
    %v182 = vmul.f32 %v133, 0.5
    %v183 = vmul.f32 %v137, 0.5
    %v184 = vtanh.pop %v182
    %v185 = vtanh.pop %v183
    %v186 = vmul.f32 %v184, 0.5
    %v187 = vmul.f32 %v185, 0.5
    %v188 = vadd.f32 %v186, 0.5
    %v189 = vadd.f32 %v187, 0.5
    %v190 = vtanh.pop %v135
    %v191 = vtanh.pop %v139
    %v192 = vmul.f32 %v176, 0.5
    %v193 = vmul.f32 %v179, 0.5
    %v194 = vtanh.pop %v192
    %v195 = vtanh.pop %v193
    %v196 = vmul.f32 %v194, 0.5
    %v197 = vmul.f32 %v195, 0.5
    %v198 = vadd.f32 %v196, 0.5
    %v199 = vadd.f32 %v197, 0.5
    %v200 = vmul.f32 %v188, %v190
    %v201 = vmul.f32 %v189, %v191
    %v202 = vtanh.pop %v200
    %v203 = vtanh.pop %v201
    %v204 = vmul.f32 %v198, %v202
    %v205 = vmul.f32 %v199, %v203
    %v206 = vpack.c.bf16 %v205, %v204
    %v207 = vld [vmem:[%s3] sm:$0xf]
    %v208 = vld [vmem:[%s3 + $0x4] sm:$0xf]
    %v209 = vld [vmem:[%s3 + $0x8] sm:$0xf]
    %v210 = vld [vmem:[%s3 + $0xc] sm:$0xf]
    %v211 = vld [vmem:[%s3 + $0x10] sm:$0xf]
    %v212 = vld [vmem:[%s3 + $0x14] sm:$0xf]
    %v213 = vld [vmem:[%s3 + $0x18] sm:$0xf]
    %v214 = vld [vmem:[%s3 + $0x1c] sm:$0xf]
    %v215 = vld [vmem:[%s3 + $0x20] sm:$0xf]
    %v216 = vld [vmem:[%s3 + $0x24] sm:$0xf]
    %v217 = vld [vmem:[%s3 + $0x28] sm:$0xf]
    %v218 = vld [vmem:[%s3 + $0x2c] sm:$0xf]
    %v219 = vld [vmem:[%s3 + $0x30] sm:$0xf]
    %v220 = vld [vmem:[%s3 + $0x34] sm:$0xf]
    %v221 = vld [vmem:[%s3 + $0x38] sm:$0xf]
    %v222 = vld [vmem:[%s3 + $0x3c] sm:$0xf]
    %v223 = vld [vmem:[%s4] sm:$0x1]
    %v225 = vlaneseq
    %v226 = vshrl.u32 %v225, 7
    %v227 = vsub.s32 0, %v226
    %v228 = vrot.slane %v223, %v227
    %v246 = vunpack.c.l.b16 %v207
    %v247 = vunpack.c.l.b16 %v208
    %v248 = vunpack.c.l.b16 %v209
    %v249 = vunpack.c.l.b16 %v210
    %v250 = vunpack.c.l.b16 %v211
    %v251 = vunpack.c.l.b16 %v212
    %v252 = vunpack.c.l.b16 %v213
    %v253 = vunpack.c.l.b16 %v214
    %v254 = vunpack.c.l.b16 %v215
    %v255 = vunpack.c.l.b16 %v216
    %v256 = vunpack.c.l.b16 %v217
    %v257 = vunpack.c.l.b16 %v218
    %v258 = vunpack.c.l.b16 %v219
    %v259 = vunpack.c.l.b16 %v220
    %v260 = vunpack.c.l.b16 %v221
    %v261 = vunpack.c.l.b16 %v222
    %v262 = vpack.c.b16 %v247, %v246
    %v263 = vpack.c.b16 %v249, %v248
    %v264 = vpack.c.b16 %v251, %v250
    %v265 = vpack.c.b16 %v253, %v252
    %v266 = vpack.c.b16 %v255, %v254
    %v267 = vpack.c.b16 %v257, %v256
    %v268 = vpack.c.b16 %v259, %v258
    %v269 = vpack.c.b16 %v261, %v260
    %278 = vmatprep.subr.bf16.mxu0 0
    %279 = vmatpush1.bf16.msra.mxu0 %v262
    %280 = vmatprep.subr.bf16.mxu0 0
    %281 = vmatpush1.bf16.msra.mxu0 %v263
    %282 = vmatprep.subr.bf16.mxu0 0
    %283 = vmatpush1.bf16.msra.mxu0 %v264
    %284 = vmatprep.subr.bf16.mxu0 0
    %285 = vmatpush1.bf16.msra.mxu0 %v265
    %286 = vmatprep.subr.bf16.mxu0 0
    %287 = vmatpush1.bf16.msra.mxu0 %v266
    %288 = vmatprep.subr.bf16.mxu0 0
    %289 = vmatpush1.bf16.msra.mxu0 %v267
    %290 = vmatprep.subr.bf16.mxu0 0
    %291 = vmatpush1.bf16.msra.mxu0 %v268
    %292 = vmatprep.subr.bf16.mxu0 0
    %293 = vmatpush1.bf16.msra.mxu0 %v269
    %294 = vmatprep.subr.bf16.mxu0 0
    %295 = vmatpush1.bf16.msra.mxu0 0
    %296 = vmatprep.subr.bf16.mxu0 0
    %297 = vmatpush1.bf16.msra.mxu0 0
    %298 = vmatprep.subr.bf16.mxu0 0
    %299 = vmatpush1.bf16.msra.mxu0 0
    %300 = vmatprep.subr.bf16.mxu0 0
    %301 = vmatpush1.bf16.msra.mxu0 0
    %302 = vmatprep.subr.bf16.mxu0 0
    %303 = vmatpush1.bf16.msra.mxu0 0
    %304 = vmatprep.subr.bf16.mxu0 0
    %305 = vmatpush1.bf16.msra.mxu0 0
    %306 = vmatprep.subr.bf16.mxu0 0
    %307 = vmatpush1.bf16.msra.mxu0 0
    %308 = vmatprep.subr.bf16.mxu0 0
    %309 = vmatpush1.bf16.msra.mxu0 0
    %310 = vmatprep.mubr.bf16.mxu0 0
    %311 = vmatmul.mubr.bf16.gmra.mrb[0].mxu0 %v206
    %v312 = vpop.f32.mrb[0].mxu0
    %v313 = vadd.f32 %v228, %v312
    %v314 = vpop.f32.mrb[0].mxu0
    %v315 = vpop.f32.mrb[0].mxu0
    %v316 = vadd.f32 %v228, %v315
    %v317 = vpop.f32.mrb[0].mxu0
    %318 = vdwg.mxu0
    %v319 = vmax.f32 %v313, 0.0
    %v320 = vmax.f32 %v316, 0.0
    %v321 = vld [vmem:[%s5] sm:$0x1]
    %v322 = vpack.c.bf16 %v320, %v319
    %v323 = vld [vmem:[#allocation2] sm:$0x1]
    %325 = vset.pattern.permute.xlu0 0
    %326 = vperm.xlu0 %325, %v323
    %v327 = vpop.permute.xlu0 %326
    %v329 = vlaneseq
    %v330 = vshrl.u32 %v329, 7
    %v331 = vsub.s32 0, %v330
    %v332 = vrot.slane %v327, %v331
    %vm333 = vcmask 261120
    %v335 = vsel %vm333, %v321, 0
    %v338 = vsel %vm333, %v322, 0
    %340 = vmatprep.subr.bf16.mxu0 0
    %341 = vmatpush1.bf16.xpose.msra.mxu0 %v338
    %342 = vmatprep.subr.bf16.mxu0 0
    %343 = vmatpush1.bf16.xpose.msra.mxu0 0
    %344 = vmatprep.subr.bf16.mxu0 0
    %345 = vmatpush1.bf16.xpose.msra.mxu0 0
    %346 = vmatprep.subr.bf16.mxu0 0
    %347 = vmatpush1.bf16.xpose.msra.mxu0 0
    %348 = vmatprep.subr.bf16.mxu0 0
    %349 = vmatpush1.bf16.xpose.msra.mxu0 0
    %350 = vmatprep.subr.bf16.mxu0 0
    %351 = vmatpush1.bf16.xpose.msra.mxu0 0
    %352 = vmatprep.subr.bf16.mxu0 0
    %353 = vmatpush1.bf16.xpose.msra.mxu0 0
    %354 = vmatprep.subr.bf16.mxu0 0
    %355 = vmatpush1.bf16.xpose.msra.mxu0 0
    %356 = vmatprep.subr.bf16.mxu0 0
    %357 = vmatpush1.bf16.xpose.msra.mxu0 0
    %358 = vmatprep.subr.bf16.mxu0 0
    %359 = vmatpush1.bf16.xpose.msra.mxu0 0
    %360 = vmatprep.subr.bf16.mxu0 0
    %361 = vmatpush1.bf16.xpose.msra.mxu0 0
    %362 = vmatprep.subr.bf16.mxu0 0
    %363 = vmatpush1.bf16.xpose.msra.mxu0 0
    %364 = vmatprep.subr.bf16.mxu0 0
    %365 = vmatpush1.bf16.xpose.msra.mxu0 0
    %366 = vmatprep.subr.bf16.mxu0 0
    %367 = vmatpush1.bf16.xpose.msra.mxu0 0
    %368 = vmatprep.subr.bf16.mxu0 0
    %369 = vmatpush1.bf16.xpose.msra.mxu0 0
    %370 = vmatprep.subr.bf16.mxu0 0
    %371 = vmatpush1.bf16.xpose.msra.mxu0 0
    %372 = vmatprep.mubr.bf16.mxu0 0
    %373 = vmatmul.mubr.bf16.gmra.mrb[0].mxu0 %v335
    %v374 = vpop.f32.mrb[0].mxu0
    %v375 = vadd.f32 %v332, %v374
    %v376 = vpop.f32.mrb[0].mxu0
    %v377 = vpop.f32.mrb[0].mxu0
    %v378 = vpop.f32.mrb[0].mxu0
    %379 = vdwg.mxu0
    %vm380 = vcmask 122880
    %381 = vst.msk [vmem:[#allocation3] sm:$0x1] %vm380, %v375
    // Predicated region
    $region30: #{tpu_custom_call.1} parent=1 // pred_check
      _
    $region31: #{tpu_custom_call.1} parent=1 // pred_check_branch
      %383 = sbr.rel (0) target = $region33
    $region32: #{tpu_custom_call.1} parent=1 // pred_region
      %s385 = ssub.s32 16, 16
      %386 = vsyncadd [#allocation4], %s385
      %s388 = sshll.u32 [#allocation3], 4
      %s389 = int_to_ptr.vmem [resolvable:$true] %s388
      %391 = dma.vmem_to_hbm [thread:$0]  %s389, 16, %s7, [#allocation4]
    $region33: #{tpu_custom_call.1} parent=1 // pred_fallthru
      _
    // Predicated region
    $region34: #{tpu_custom_call.1} parent=1 // pred_check
      _
    $region35: #{tpu_custom_call.1} parent=1 // pred_check_branch
      %393 = sbr.rel (0) target = $region37
    $region36: #{tpu_custom_call.1} parent=1 // pred_region
      %394 = dma.done [#allocation4], 16
    $region37: #{tpu_custom_call.1} parent=1 // pred_fallthru
      _
    %395 = vsyncpa [#allocation4], 1

</llo_original>
